<compile_context>
chip_gen: v6e
topology: v6e:2x2x1
jax: 0.10.0
libtpu: 0.0.40
codegen_flags: <defaults>
</compile_context>

<pallas_src>
import jax
import jax.numpy as jnp
import numpy as np
from jax.experimental import pallas as pl
from jax.experimental.pallas import tpu as pltpu

_OUT_LANES = 128                      # lane-dense padded output width
_VMEM_LIMIT = 48 * 1024 * 1024        # safe on v5e/v6e (128 MiB) and v7x (64 MiB)


def _pick_row_tile(n):
    for t in (256, 128, 64, 32, 16, 8):
        if n % t == 0:
            return t
    return n  # block == full dim is always legal


def _mosaic_params():
    return pltpu.CompilerParams(
        dimension_semantics=("parallel",),
        vmem_limit_bytes=_VMEM_LIMIT)


# ---------------------------------------------------------------------------
# Kernel 1: row-tiled propagation   P[tile] = A[tile, :] @ Z
# ---------------------------------------------------------------------------
def _propagate_kernel(a_ref, z_ref, o_ref):
    o_ref[...] = jnp.dot(a_ref[...], z_ref[...].astype(jnp.bfloat16),
                         preferred_element_type=jnp.float32)


def _propagate(a_bf16, z, tm):
    n = a_bf16.shape[0]
    f = z.shape[1]
    ce = pl.CostEstimate(flops=2 * n * n * f, transcendentals=0,
                         bytes_accessed=int(a_bf16.size * 2 + z.size * 4 + n * f * 4))
    return pl.pallas_call(
        _propagate_kernel,
        out_shape=jax.ShapeDtypeStruct((n, f), jnp.float32),
        grid=(n // tm,),
        in_specs=[pl.BlockSpec((tm, n), lambda i: (i, 0)),   # A row tile (bf16)
                  pl.BlockSpec((n, f), lambda i: (0, 0))],   # full RHS, stays resident
        out_specs=pl.BlockSpec((tm, f), lambda i: (i, 0)),
        compiler_params=_mosaic_params(),
        cost_estimate=ce,
    )(a_bf16, z)


# ---------------------------------------------------------------------------
# Kernel 2: 3rd-order propagation + context combine + ctx @ W   ->  H[tile]
#   p3 = A @ p2                                   (row tile)
#   q2 = p2 - d2*x            (A2 @ xr1 == roll(q2, 1, axis=1))
#   q3 = p3 - d2*p1 - d3*x    (A3 @ xr2 == roll(q3, 2, axis=1))
#   H  = x @ (w0*W) + p1 @ (w1*W) + q2 @ (w2*roll(W,-1,0)) + q3 @ (w3*roll(W,-2,0))
# ---------------------------------------------------------------------------
def _combine_kernel(a_ref, x_ref, p1_ref, p2_ref, d2_ref, d3_ref,
                    w0_ref, w1_ref, w2_ref, w3_ref, h_ref):
    tm = x_ref.shape[0]
    row0 = pl.multiple_of(pl.program_id(0) * tm, tm)

    x_t = x_ref[...]
    p1_t = p1_ref[...]
    p2_all = p2_ref[...]
    p2_t = p2_ref[pl.ds(row0, tm), :]

    p3_t = jnp.dot(a_ref[...], p2_all.astype(jnp.bfloat16),
                   preferred_element_type=jnp.float32)

    d2_t = d2_ref[...]
    d3_t = d3_ref[...]
    q2 = p2_t - d2_t * x_t
    q3 = p3_t - d2_t * p1_t - d3_t * x_t

    h = jnp.dot(x_t.astype(jnp.bfloat16), w0_ref[...],
                preferred_element_type=jnp.float32)
    h += jnp.dot(p1_t.astype(jnp.bfloat16), w1_ref[...],
                 preferred_element_type=jnp.float32)
    h += jnp.dot(q2.astype(jnp.bfloat16), w2_ref[...],
                 preferred_element_type=jnp.float32)
    h += jnp.dot(q3.astype(jnp.bfloat16), w3_ref[...],
                 preferred_element_type=jnp.float32)
    h_ref[...] = h


# ---------------------------------------------------------------------------
# Kernel 3: GCN aggregation  out[tile] = relu(Ahat[tile, :] @ H + b)
# ---------------------------------------------------------------------------
def _gcn_aggregate_kernel(ahat_ref, h_ref, b_ref, o_ref):
    agg = jnp.dot(ahat_ref[...], h_ref[...].astype(jnp.bfloat16),
                  preferred_element_type=jnp.float32)
    o_ref[...] = jnp.maximum(agg + b_ref[...], 0.0)


# ---------------------------------------------------------------------------
# Forward
# ---------------------------------------------------------------------------
def ricrd_forward(x, edge_index, params):
    """x: [N, d_in] f32, edge_index: [2, E] int32 (treated as undirected)."""
    N, d_in = x.shape
    d_out = params["conv_w"].shape[1]
    tm = _pick_row_tile(N)

    # -------- structural preprocessing (plain JAX) ------------------------
    src, dst = edge_index[0], edge_index[1]
    A = jnp.zeros((N, N), jnp.float32).at[src, dst].set(1.0)
    A = jnp.maximum(A, A.T)                          # is_directed=False
    eye = jnp.eye(N, dtype=jnp.float32)
    A = A * (1.0 - eye)                              # no self loops in raw adjacency

    # Diagonal-correction vectors so A2/A3 never materialize:
    #   A2 @ v = A@(A@v) - d2*v,   A3 @ v = A@(A@(A@v)) - d2*(A@v) - d3*v
    d2 = jnp.sum(A * A.T, axis=1, keepdims=True)             # diag(A^2), O(N^2)
    d3 = jnp.sum((A @ A) * A.T, axis=1, keepdims=True)       # diag(A^3) (vector only)

    # GCNConv normalization: D^-1/2 (A + I) D^-1/2
    A_sl = A + eye
    deg = A_sl.sum(axis=1)
    dinv = jnp.where(deg > 0, 1.0 / jnp.sqrt(deg), 0.0)
    Ahat = dinv[:, None] * A_sl * dinv[None, :]

    A_bf = A.astype(jnp.bfloat16)
    Ahat_bf = Ahat.astype(jnp.bfloat16)

    # get_orders(): relu then normalize
    raw = jnp.stack([params["zeroth"], params["fst"],
                     params["snd"], params["trd"]]).astype(jnp.float32)
    r = jnp.maximum(raw, 0.0)
    orders = r / (r.sum() + 1e-6)
    w0, w1, w2, w3 = orders[0], orders[1], orders[2], orders[3]

    # Pad W/b to 128 output lanes (lane-dense stores); fold the feature-dim
    # rolls and order scalars into the (tiny) weight copies.
    W = params["conv_w"].astype(jnp.float32)
    Wpad = jnp.zeros((d_in, _OUT_LANES), jnp.float32).at[:, :d_out].set(W)
    W0 = (w0 * Wpad).astype(jnp.bfloat16)
    W1 = (w1 * Wpad).astype(jnp.bfloat16)
    W2 = (w2 * jnp.roll(Wpad, -1, axis=0)).astype(jnp.bfloat16)
    W3 = (w3 * jnp.roll(Wpad, -2, axis=0)).astype(jnp.bfloat16)
    b_pad = jnp.zeros((1, _OUT_LANES), jnp.float32).at[0, :d_out].set(
        params["conv_b"].astype(jnp.float32))

    # -------- Pallas hot path (chained SpMMs + GCN) ------------------------
    p1 = _propagate(A_bf, x, tm)     # A @ x
    p2 = _propagate(A_bf, p1, tm)    # A @ (A @ x)

    grid = (N // tm,)
    ce_c = pl.CostEstimate(
        flops=2 * N * N * d_in + 8 * N * d_in * _OUT_LANES,
        transcendentals=0,
        bytes_accessed=int(A_bf.size * 2 + 3 * N * d_in * 4 + 2 * N * 4
                           + 4 * d_in * _OUT_LANES * 2 + N * _OUT_LANES * 4))
    H = pl.pallas_call(
        _combine_kernel,
        out_shape=jax.ShapeDtypeStruct((N, _OUT_LANES), jnp.float32),
        grid=grid,
        in_specs=[pl.BlockSpec((tm, N), lambda i: (i, 0)),            # A rows
                  pl.BlockSpec((tm, d_in), lambda i: (i, 0)),         # x rows
                  pl.BlockSpec((tm, d_in), lambda i: (i, 0)),         # p1 rows
                  pl.BlockSpec((N, d_in), lambda i: (0, 0)),          # p2 (full)
                  pl.BlockSpec((tm, 1), lambda i: (i, 0)),            # d2 rows
                  pl.BlockSpec((tm, 1), lambda i: (i, 0)),            # d3 rows
                  pl.BlockSpec((d_in, _OUT_LANES), lambda i: (0, 0)),
                  pl.BlockSpec((d_in, _OUT_LANES), lambda i: (0, 0)),
                  pl.BlockSpec((d_in, _OUT_LANES), lambda i: (0, 0)),
                  pl.BlockSpec((d_in, _OUT_LANES), lambda i: (0, 0))],
        out_specs=pl.BlockSpec((tm, _OUT_LANES), lambda i: (i, 0)),
        compiler_params=_mosaic_params(),
        cost_estimate=ce_c,
    )(A_bf, x, p1, p2, d2, d3, W0, W1, W2, W3)

    ce_g = pl.CostEstimate(
        flops=2 * N * N * _OUT_LANES, transcendentals=0,
        bytes_accessed=int(Ahat_bf.size * 2 + H.size * 4
                           + _OUT_LANES * 4 + N * _OUT_LANES * 4))
    out_pad = pl.pallas_call(
        _gcn_aggregate_kernel,
        out_shape=jax.ShapeDtypeStruct((N, _OUT_LANES), jnp.float32),
        grid=grid,
        in_specs=[pl.BlockSpec((tm, N), lambda i: (i, 0)),            # Ahat rows
                  pl.BlockSpec((N, _OUT_LANES), lambda i: (0, 0)),    # H (full)
                  pl.BlockSpec((1, _OUT_LANES), lambda i: (0, 0))],   # bias
        out_specs=pl.BlockSpec((tm, _OUT_LANES), lambda i: (i, 0)),
        compiler_params=_mosaic_params(),
        cost_estimate=ce_g,
    )(Ahat_bf, H, b_pad)

    return out_pad[:, :d_out]


# ---------------------------------------------------------------------------
# Pure-JAX reference (mirrors the original torch formulation; validation only)
# ---------------------------------------------------------------------------
def ricrd_reference(x, edge_index, params):
    N, _ = x.shape
    src, dst = edge_index[0], edge_index[1]
    A = jnp.zeros((N, N), jnp.float32).at[src, dst].set(1.0)
    A = jnp.maximum(A, A.T)
    eye = jnp.eye(N, dtype=jnp.float32)
    A = A * (1.0 - eye)
    A2 = (A @ A) * (1.0 - eye)
    A3 = (A2 @ A) * (1.0 - eye)
    A_sl = A + eye
    deg = A_sl.sum(axis=1)
    dinv = jnp.where(deg > 0, 1.0 / jnp.sqrt(deg), 0.0)
    Ahat = dinv[:, None] * A_sl * dinv[None, :]
    raw = jnp.stack([params["zeroth"], params["fst"],
                     params["snd"], params["trd"]]).astype(jnp.float32)
    r = jnp.maximum(raw, 0.0)
    o = r / (r.sum() + 1e-6)
    ctx = (o[0] * x + o[1] * (A @ x)
           + o[2] * (A2 @ jnp.roll(x, 1, axis=1))
           + o[3] * (A3 @ jnp.roll(x, 2, axis=1)))
    h = ctx @ params["conv_w"].astype(jnp.float32)
    return jnp.maximum(Ahat @ h + params["conv_b"].astype(jnp.float32)[None, :], 0.0)


def init_params(key, d_in, d_out):
    k1, k2, k3, k4 = jax.random.split(key, 4)
    return {
        "zeroth": jnp.array(1.0, jnp.float32),
        "fst": jax.random.normal(k1, (), jnp.float32),
        "snd": jax.random.normal(k2, (), jnp.float32),
        "trd": jax.random.normal(k3, (), jnp.float32),
        "conv_w": jax.random.uniform(
            k4, (d_in, d_out), jnp.float32,
            minval=-jnp.sqrt(6.0 / (d_in + d_out)),
            maxval=jnp.sqrt(6.0 / (d_in + d_out))),
        "conv_b": jnp.zeros((d_out,), jnp.float32),
    }


if __name__ == "__main__":
    key = jax.random.PRNGKey(0)
    k_x, k_e, k_p = jax.random.split(key, 3)

    N, d_in, d_out, n_extra_edges = 32, 16, 8, 32

    x = jax.random.normal(k_x, (N, d_in), jnp.float32)

    ring_src = jnp.arange(N, dtype=jnp.int32)
    ring_dst = (ring_src + 1) % N
    rnd = jax.random.randint(k_e, (2, n_extra_edges), 0, N, dtype=jnp.int32)
    edge_index = jnp.concatenate(
        [jnp.stack([ring_src, ring_dst]), rnd], axis=1)  # [2, E]

    params = init_params(k_p, d_in, d_out)

    out = jax.jit(ricrd_forward)(x, edge_index, params)
    jax.block_until_ready(out)

    assert out.shape == (N, d_out) and out.dtype == jnp.float32
    ref = ricrd_reference(x, edge_index, params)
    # Loose tolerance: adjacency / feature operands are fed to the MXU in bf16
    # (f32 accumulation); a structural error would be orders of magnitude larger.
    np.testing.assert_allclose(np.asarray(out), np.asarray(ref),
                               rtol=5e-2, atol=5e-1)
    print("KERNEL_OK")
</pallas_src>

<mosaic_0001>
module attributes {stable_mosaic.version = 11 : i64} {
  func.func @_propagate_kernel(%arg0: i32, %arg1: memref<32x32xbf16, #tpu.memory_space<vmem>>, %arg2: memref<32x16xf32, #tpu.memory_space<vmem>>, %arg3: memref<32x16xf32, #tpu.memory_space<vmem>>) attributes {dimension_semantics = [#tpu.dimension_semantics<parallel>], iteration_bounds = array<i64: 1>, scalar_prefetch = 0 : i64, scratch_operands = 0 : i64, tpu.core_type = #tpu.core_type<tc>, window_params = [{transform_indices = @transform_0, window_bounds = array<i64: 32, 32>}, {pipeline_mode = #tpu.pipeline_mode<synchronous>, transform_indices = @transform_1, window_bounds = array<i64: 32, 16>}, {transform_indices = @transform_2, window_bounds = array<i64: 32, 16>}]} {
    %c0 = arith.constant 0 : index
    %c0_0 = arith.constant 0 : index
    %0 = vector.load %arg1[%c0, %c0_0] : memref<32x32xbf16, #tpu.memory_space<vmem>>, vector<32x32xbf16>
    %c0_1 = arith.constant 0 : index
    %c0_2 = arith.constant 0 : index
    %1 = vector.load %arg2[%c0_1, %c0_2] : memref<32x16xf32, #tpu.memory_space<vmem>>, vector<32x16xf32>
    %2 = arith.truncf %1 : vector<32x16xf32> to vector<32x16xbf16>
    %cst = arith.constant dense<0.000000e+00> : vector<32x16xf32>
    %3 = tpu.matmul %0, %2, %cst {dimension_numbers = #tpu.dot_dimension_numbers<[1], [0], [0], [1], [0, 0, 1, 1], [], []>} : vector<32x32xbf16>, vector<32x16xbf16>, vector<32x16xf32> -> vector<32x16xf32>
    %c0_3 = arith.constant 0 : index
    %c0_4 = arith.constant 0 : index
    %4 = vector.load %arg3[%c0_3, %c0_4] : memref<32x16xf32, #tpu.memory_space<vmem>>, vector<32x16xf32>
    tpu.vector_store %arg3[%c0_3, %c0_4], %3 {strides = array<i32>} : memref<32x16xf32, #tpu.memory_space<vmem>>, vector<32x16xf32>,
    return
  }
  func.func @transform_0(%arg0: i32) -> (i32, i32) {
    %c0_i32 = arith.constant 0 : i32
    %c0_i32_0 = arith.constant 0 : i32
    return %arg0, %c0_i32 : i32, i32
  }
  func.func @transform_1(%arg0: i32) -> (i32, i32) {
    %c0_i32 = arith.constant 0 : i32
    %c0_i32_0 = arith.constant 0 : i32
    %c0_i32_1 = arith.constant 0 : i32
    return %c0_i32, %c0_i32_0 : i32, i32
  }
  func.func @transform_2(%arg0: i32) -> (i32, i32) {
    %c0_i32 = arith.constant 0 : i32
    %c0_i32_0 = arith.constant 0 : i32
    return %arg0, %c0_i32 : i32, i32
  }
}

module attributes {stable_mosaic.version = 11 : i64} {
  func.func @_gcn_aggregate_kernel(%arg0: i32, %arg1: memref<32x32xbf16, #tpu.memory_space<vmem>>, %arg2: memref<32x128xf32, #tpu.memory_space<vmem>>, %arg3: memref<1x128xf32, #tpu.memory_space<vmem>>, %arg4: memref<32x128xf32, #tpu.memory_space<vmem>>) attributes {dimension_semantics = [#tpu.dimension_semantics<parallel>], iteration_bounds = array<i64: 1>, scalar_prefetch = 0 : i64, scratch_operands = 0 : i64, tpu.core_type = #tpu.core_type<tc>, window_params = [{transform_indices = @transform_0, window_bounds = array<i64: 32, 32>}, {pipeline_mode = #tpu.pipeline_mode<synchronous>, transform_indices = @transform_1, window_bounds = array<i64: 32, 128>}, {pipeline_mode = #tpu.pipeline_mode<synchronous>, transform_indices = @transform_2, window_bounds = array<i64: 1, 128>}, {transform_indices = @transform_3, window_bounds = array<i64: 32, 128>}]} {
    %c0 = arith.constant 0 : index
    %c0_0 = arith.constant 0 : index
    %0 = vector.load %arg1[%c0, %c0_0] : memref<32x32xbf16, #tpu.memory_space<vmem>>, vector<32x32xbf16>
    %c0_1 = arith.constant 0 : index
    %c0_2 = arith.constant 0 : index
    %1 = vector.load %arg2[%c0_1, %c0_2] : memref<32x128xf32, #tpu.memory_space<vmem>>, vector<32x128xf32>
    %2 = arith.truncf %1 : vector<32x128xf32> to vector<32x128xbf16>
    %cst = arith.constant dense<0.000000e+00> : vector<32x128xf32>
    %3 = tpu.matmul %0, %2, %cst {dimension_numbers = #tpu.dot_dimension_numbers<[1], [0], [0], [1], [0, 0, 1, 1], [], []>} : vector<32x32xbf16>, vector<32x128xbf16>, vector<32x128xf32> -> vector<32x128xf32>
    %c0_3 = arith.constant 0 : index
    %c0_4 = arith.constant 0 : index
    %4 = vector.load %arg3[%c0_3, %c0_4] : memref<1x128xf32, #tpu.memory_space<vmem>>, vector<1x128xf32>
    %5 = vector.broadcast %4 : vector<1x128xf32> to vector<32x128xf32>
    %6 = arith.addf %3, %5 : vector<32x128xf32>
    %cst_5 = arith.constant 0.000000e+00 : f32
    %7 = vector.broadcast %cst_5 : f32 to vector<32x128xf32>
    %8 = arith.maximumf %6, %7 : vector<32x128xf32>
    %c0_6 = arith.constant 0 : index
    %c0_7 = arith.constant 0 : index
    %9 = vector.load %arg4[%c0_6, %c0_7] : memref<32x128xf32, #tpu.memory_space<vmem>>, vector<32x128xf32>
    tpu.vector_store %arg4[%c0_6, %c0_7], %8 {strides = array<i32>} : memref<32x128xf32, #tpu.memory_space<vmem>>, vector<32x128xf32>,
    return
  }
  func.func @transform_0(%arg0: i32) -> (i32, i32) {
    %c0_i32 = arith.constant 0 : i32
    %c0_i32_0 = arith.constant 0 : i32
    return %arg0, %c0_i32 : i32, i32
  }
  func.func @transform_1(%arg0: i32) -> (i32, i32) {
    %c0_i32 = arith.constant 0 : i32
    %c0_i32_0 = arith.constant 0 : i32
    %c0_i32_1 = arith.constant 0 : i32
    return %c0_i32, %c0_i32_0 : i32, i32
  }
  func.func @transform_2(%arg0: i32) -> (i32, i32) {
    %c0_i32 = arith.constant 0 : i32
    %c0_i32_0 = arith.constant 0 : i32
    %c0_i32_1 = arith.constant 0 : i32
    return %c0_i32, %c0_i32_0 : i32, i32
  }
  func.func @transform_3(%arg0: i32) -> (i32, i32) {
    %c0_i32 = arith.constant 0 : i32
    %c0_i32_0 = arith.constant 0 : i32
    return %arg0, %c0_i32 : i32, i32
  }
}

module attributes {stable_mosaic.version = 11 : i64} {
  func.func @_combine_kernel(%arg0: i32, %arg1: memref<32x32xbf16, #tpu.memory_space<vmem>>, %arg2: memref<32x16xf32, #tpu.memory_space<vmem>>, %arg3: memref<32x16xf32, #tpu.memory_space<vmem>>, %arg4: memref<32x16xf32, #tpu.memory_space<vmem>>, %arg5: memref<32x1xf32, #tpu.memory_space<vmem>>, %arg6: memref<32x1xf32, #tpu.memory_space<vmem>>, %arg7: memref<16x128xbf16, #tpu.memory_space<vmem>>, %arg8: memref<16x128xbf16, #tpu.memory_space<vmem>>, %arg9: memref<16x128xbf16, #tpu.memory_space<vmem>>, %arg10: memref<16x128xbf16, #tpu.memory_space<vmem>>, %arg11: memref<32x128xf32, #tpu.memory_space<vmem>>) attributes {dimension_semantics = [#tpu.dimension_semantics<parallel>], iteration_bounds = array<i64: 1>, scalar_prefetch = 0 : i64, scratch_operands = 0 : i64, tpu.core_type = #tpu.core_type<tc>, window_params = [{transform_indices = @transform_0, window_bounds = array<i64: 32, 32>}, {transform_indices = @transform_1, window_bounds = array<i64: 32, 16>}, {transform_indices = @transform_2, window_bounds = array<i64: 32, 16>}, {pipeline_mode = #tpu.pipeline_mode<synchronous>, transform_indices = @transform_3, window_bounds = array<i64: 32, 16>}, {transform_indices = @transform_4, window_bounds = array<i64: 32, 1>}, {transform_indices = @transform_5, window_bounds = array<i64: 32, 1>}, {pipeline_mode = #tpu.pipeline_mode<synchronous>, transform_indices = @transform_6, window_bounds = array<i64: 16, 128>}, {pipeline_mode = #tpu.pipeline_mode<synchronous>, transform_indices = @transform_7, window_bounds = array<i64: 16, 128>}, {pipeline_mode = #tpu.pipeline_mode<synchronous>, transform_indices = @transform_8, window_bounds = array<i64: 16, 128>}, {pipeline_mode = #tpu.pipeline_mode<synchronous>, transform_indices = @transform_9, window_bounds = array<i64: 16, 128>}, {transform_indices = @transform_10, window_bounds = array<i64: 32, 128>}]} {
    %c32_i32 = arith.constant 32 : i32
    %0 = arith.muli %arg0, %c32_i32 : i32
    %1 = tpu.assume_multiple %0, 32 : i32
    %c0 = arith.constant 0 : index
    %c0_0 = arith.constant 0 : index
    %2 = vector.load %arg2[%c0, %c0_0] : memref<32x16xf32, #tpu.memory_space<vmem>>, vector<32x16xf32>
    %c0_1 = arith.constant 0 : index
    %c0_2 = arith.constant 0 : index
    %3 = vector.load %arg3[%c0_1, %c0_2] : memref<32x16xf32, #tpu.memory_space<vmem>>, vector<32x16xf32>
    %c0_3 = arith.constant 0 : index
    %c0_4 = arith.constant 0 : index
    %4 = vector.load %arg4[%c0_3, %c0_4] : memref<32x16xf32, #tpu.memory_space<vmem>>, vector<32x16xf32>
    %5 = arith.index_cast %1 : i32 to index
    %c0_5 = arith.constant 0 : index
    %6 = vector.load %arg4[%5, %c0_5] : memref<32x16xf32, #tpu.memory_space<vmem>>, vector<32x16xf32>
    %c0_6 = arith.constant 0 : index
    %c0_7 = arith.constant 0 : index
    %7 = vector.load %arg1[%c0_6, %c0_7] : memref<32x32xbf16, #tpu.memory_space<vmem>>, vector<32x32xbf16>
    %8 = arith.truncf %4 : vector<32x16xf32> to vector<32x16xbf16>
    %cst = arith.constant dense<0.000000e+00> : vector<32x16xf32>
    %9 = tpu.matmul %7, %8, %cst {dimension_numbers = #tpu.dot_dimension_numbers<[1], [0], [0], [1], [0, 0, 1, 1], [], []>} : vector<32x32xbf16>, vector<32x16xbf16>, vector<32x16xf32> -> vector<32x16xf32>
    %c0_8 = arith.constant 0 : index
    %c0_9 = arith.constant 0 : index
    %10 = vector.load %arg5[%c0_8, %c0_9] : memref<32x1xf32, #tpu.memory_space<vmem>>, vector<32x1xf32>
    %c0_10 = arith.constant 0 : index
    %c0_11 = arith.constant 0 : index
    %11 = vector.load %arg6[%c0_10, %c0_11] : memref<32x1xf32, #tpu.memory_space<vmem>>, vector<32x1xf32>
    %12 = vector.broadcast %10 : vector<32x1xf32> to vector<32x16xf32>
    %13 = arith.mulf %12, %2 : vector<32x16xf32>
    %14 = arith.subf %6, %13 : vector<32x16xf32>
    %15 = vector.broadcast %10 : vector<32x1xf32> to vector<32x16xf32>
    %16 = arith.mulf %15, %3 : vector<32x16xf32>
    %17 = arith.subf %9, %16 : vector<32x16xf32>
    %18 = vector.broadcast %11 : vector<32x1xf32> to vector<32x16xf32>
    %19 = arith.mulf %18, %2 : vector<32x16xf32>
    %20 = arith.subf %17, %19 : vector<32x16xf32>
    %21 = arith.truncf %2 : vector<32x16xf32> to vector<32x16xbf16>
    %c0_12 = arith.constant 0 : index
    %c0_13 = arith.constant 0 : index
    %22 = vector.load %arg7[%c0_12, %c0_13] : memref<16x128xbf16, #tpu.memory_space<vmem>>, vector<16x128xbf16>
    %cst_14 = arith.constant dense<0.000000e+00> : vector<32x128xf32>
    %23 = tpu.matmul %21, %22, %cst_14 {dimension_numbers = #tpu.dot_dimension_numbers<[1], [0], [0], [1], [0, 0, 1, 1], [], []>} : vector<32x16xbf16>, vector<16x128xbf16>, vector<32x128xf32> -> vector<32x128xf32>
    %24 = arith.truncf %3 : vector<32x16xf32> to vector<32x16xbf16>
    %c0_15 = arith.constant 0 : index
    %c0_16 = arith.constant 0 : index
    %25 = vector.load %arg8[%c0_15, %c0_16] : memref<16x128xbf16, #tpu.memory_space<vmem>>, vector<16x128xbf16>
    %cst_17 = arith.constant dense<0.000000e+00> : vector<32x128xf32>
    %26 = tpu.matmul %24, %25, %cst_17 {dimension_numbers = #tpu.dot_dimension_numbers<[1], [0], [0], [1], [0, 0, 1, 1], [], []>} : vector<32x16xbf16>, vector<16x128xbf16>, vector<32x128xf32> -> vector<32x128xf32>
    %27 = arith.addf %23, %26 : vector<32x128xf32>
    %28 = arith.truncf %14 : vector<32x16xf32> to vector<32x16xbf16>
    %c0_18 = arith.constant 0 : index
    %c0_19 = arith.constant 0 : index
    %29 = vector.load %arg9[%c0_18, %c0_19] : memref<16x128xbf16, #tpu.memory_space<vmem>>, vector<16x128xbf16>
    %cst_20 = arith.constant dense<0.000000e+00> : vector<32x128xf32>
    %30 = tpu.matmul %28, %29, %cst_20 {dimension_numbers = #tpu.dot_dimension_numbers<[1], [0], [0], [1], [0, 0, 1, 1], [], []>} : vector<32x16xbf16>, vector<16x128xbf16>, vector<32x128xf32> -> vector<32x128xf32>
    %31 = arith.addf %27, %30 : vector<32x128xf32>
    %32 = arith.truncf %20 : vector<32x16xf32> to vector<32x16xbf16>
    %c0_21 = arith.constant 0 : index
    %c0_22 = arith.constant 0 : index
    %33 = vector.load %arg10[%c0_21, %c0_22] : memref<16x128xbf16, #tpu.memory_space<vmem>>, vector<16x128xbf16>
    %cst_23 = arith.constant dense<0.000000e+00> : vector<32x128xf32>
    %34 = tpu.matmul %32, %33, %cst_23 {dimension_numbers = #tpu.dot_dimension_numbers<[1], [0], [0], [1], [0, 0, 1, 1], [], []>} : vector<32x16xbf16>, vector<16x128xbf16>, vector<32x128xf32> -> vector<32x128xf32>
    %35 = arith.addf %31, %34 : vector<32x128xf32>
    %c0_24 = arith.constant 0 : index
    %c0_25 = arith.constant 0 : index
    %36 = vector.load %arg11[%c0_24, %c0_25] : memref<32x128xf32, #tpu.memory_space<vmem>>, vector<32x128xf32>
    tpu.vector_store %arg11[%c0_24, %c0_25], %35 {strides = array<i32>} : memref<32x128xf32, #tpu.memory_space<vmem>>, vector<32x128xf32>,
    return
  }
  func.func @transform_0(%arg0: i32) -> (i32, i32) {
    %c0_i32 = arith.constant 0 : i32
    %c0_i32_0 = arith.constant 0 : i32
    return %arg0, %c0_i32 : i32, i32
  }
  func.func @transform_1(%arg0: i32) -> (i32, i32) {
    %c0_i32 = arith.constant 0 : i32
    %c0_i32_0 = arith.constant 0 : i32
    return %arg0, %c0_i32 : i32, i32
  }
  func.func @transform_2(%arg0: i32) -> (i32, i32) {
    %c0_i32 = arith.constant 0 : i32
    %c0_i32_0 = arith.constant 0 : i32
    return %arg0, %c0_i32 : i32, i32
  }
  func.func @transform_3(%arg0: i32) -> (i32, i32) {
    %c0_i32 = arith.constant 0 : i32
    %c0_i32_0 = arith.constant 0 : i32
    %c0_i32_1 = arith.constant 0 : i32
    return %c0_i32, %c0_i32_0 : i32, i32
  }
  func.func @transform_4(%arg0: i32) -> (i32, i32) {
    %c0_i32 = arith.constant 0 : i32
    %c0_i32_0 = arith.constant 0 : i32
    return %arg0, %c0_i32 : i32, i32
  }
  func.func @transform_5(%arg0: i32) -> (i32, i32) {
    %c0_i32 = arith.constant 0 : i32
    %c0_i32_0 = arith.constant 0 : i32
    return %arg0, %c0_i32 : i32, i32
  }
  func.func @transform_6(%arg0: i32) -> (i32, i32) {
    %c0_i32 = arith.constant 0 : i32
    %c0_i32_0 = arith.constant 0 : i32
    %c0_i32_1 = arith.constant 0 : i32
    return %c0_i32, %c0_i32_0 : i32, i32
  }
  func.func @transform_7(%arg0: i32) -> (i32, i32) {
    %c0_i32 = arith.constant 0 : i32
    %c0_i32_0 = arith.constant 0 : i32
    %c0_i32_1 = arith.constant 0 : i32
    return %c0_i32, %c0_i32_0 : i32, i32
  }
  func.func @transform_8(%arg0: i32) -> (i32, i32) {
    %c0_i32 = arith.constant 0 : i32
    %c0_i32_0 = arith.constant 0 : i32
    %c0_i32_1 = arith.constant 0 : i32
    return %c0_i32, %c0_i32_0 : i32, i32
  }
  func.func @transform_9(%arg0: i32) -> (i32, i32) {
    %c0_i32 = arith.constant 0 : i32
    %c0_i32_0 = arith.constant 0 : i32
    %c0_i32_1 = arith.constant 0 : i32
    return %c0_i32, %c0_i32_0 : i32, i32
  }
  func.func @transform_10(%arg0: i32) -> (i32, i32) {
    %c0_i32 = arith.constant 0 : i32
    %c0_i32_0 = arith.constant 0 : i32
    return %arg0, %c0_i32 : i32, i32
  }
}

</mosaic_0001>

<llo_original>
// kernel: ricrd_forward.4
$region0: #{ricrd_forward.4}
  #allocation0 [shape = 'u32[]', space=smem, size = 0x4, offset = 0x4, fixed_abs, tag = 'smem constant byte address 0x4 - core index']
  #allocation1 [shape = 'u32[144,128]{1,0:T(1,128)}', space=vmem, size = 0x12000, scoped, tag = 'internal scratch']
  %s0 = inlined_call_operand.vmem [shape: bf16[32,32], index: 0, kind: input, shape index: {}]
  %s1 = inlined_call_operand.vmem [shape: f32[32,16], index: 1, kind: input, shape index: {}]
  %s2 = inlined_call_operand.vmem [shape: f32[32,16], index: 2, kind: output, shape index: {}]
  %s3 = sld [smem:[#allocation0]]
  $region18: #{ricrd_forward.4} parent=0
    _
  %s5 = ssub.s32 1, %s3
  %s6 = scalar_select 0, %s5, %s3
  // Predicated region
  $region2: #{ricrd_forward.4} parent=0 // pred_check
    _
  $region3: #{ricrd_forward.4} parent=0 // pred_check_branch
    %8 = sbr.rel (0) target = $region5
  $region4: #{ricrd_forward.4} parent=0 // pred_region
    _
  $region5: #{ricrd_forward.4} parent=0 // pred_fallthru
    _
  // Predicated region
  $region6: #{ricrd_forward.4} parent=0 // pred_check
    _
  $region7: #{ricrd_forward.4} parent=0 // pred_check_branch
    %10 = sbr.rel (0) target = $region9
  $region8: #{ricrd_forward.4} parent=0 // pred_region
    _
  $region9: #{ricrd_forward.4} parent=0 // pred_fallthru
    _
  %v12 = vld [vmem:[%s0] sm:$0xf]
  %v13 = vld [vmem:[%s0 + $0x4] sm:$0xf]
  %v14 = vld [vmem:[%s0 + $0x8] sm:$0xf]
  %v15 = vld [vmem:[%s0 + $0xc] sm:$0xf]
  %v16 = vld [vmem:[%s1] sm:$0xff]
  %v17 = vld [vmem:[%s1 + $0x8] sm:$0xff]
  %v18 = vld [vmem:[%s1 + $0x10] sm:$0xff]
  %v19 = vld [vmem:[%s1 + $0x18] sm:$0xff]
  %v20 = vpack.c.bf16 %v17, %v16
  %v21 = vpack.c.bf16 %v19, %v18
  %v26 = vunpack.c.l.b16 %v12
  %v27 = vunpack.c.l.b16 %v13
  %v28 = vunpack.c.l.b16 %v14
  %v29 = vunpack.c.l.b16 %v15
  %v30 = vpack.c.b16 %v27, %v26
  %v31 = vpack.c.b16 %v29, %v28
  %vm32 = vcmask 261120
  %v34 = vsel %vm32, %v30, 0
  %v37 = vsel %vm32, %v31, 0
  %39 = vmatprep.subr.bf16.mxu0 0
  %40 = vmatpush1.bf16.msra.mxu0 0
  %41 = vmatprep.subr.bf16.mxu0 0
  %42 = vmatpush1.bf16.msra.mxu0 0
  %43 = vmatprep.subr.bf16.mxu0 0
  %44 = vmatpush1.bf16.msra.mxu0 0
  %45 = vmatprep.subr.bf16.mxu0 0
  %46 = vmatpush1.bf16.msra.mxu0 0
  %47 = vmatprep.subr.bf16.mxu0 0
  %48 = vmatpush1.bf16.msra.mxu0 0
  %49 = vmatprep.subr.bf16.mxu0 0
  %50 = vmatpush1.bf16.msra.mxu0 0
  %51 = vmatprep.subr.bf16.mxu0 0
  %52 = vmatpush1.bf16.msra.mxu0 %v21
  %53 = vmatprep.subr.bf16.mxu0 0
  %54 = vmatpush1.bf16.msra.mxu0 %v20
  %55 = vmatprep.subr.bf16.mxu0 0
  %56 = vmatpush2.bf16.msra.mxu0 0
  %57 = vmatprep.subr.bf16.mxu0 0
  %58 = vmatpush2.bf16.msra.mxu0 0
  %59 = vmatprep.subr.bf16.mxu0 0
  %60 = vmatpush2.bf16.msra.mxu0 0
  %61 = vmatprep.subr.bf16.mxu0 0
  %62 = vmatpush2.bf16.msra.mxu0 0
  %63 = vmatprep.subr.bf16.mxu0 0
  %64 = vmatpush2.bf16.msra.mxu0 0
  %65 = vmatprep.subr.bf16.mxu0 0
  %66 = vmatpush2.bf16.msra.mxu0 0
  %67 = vmatprep.subr.bf16.mxu0 0
  %68 = vmatpush2.bf16.msra.mxu0 0
  %69 = vmatprep.subr.bf16.mxu0 0
  %70 = vmatpush2.bf16.msra.mxu0 0
  %71 = vmatprep.mubr.bf16.mxu0 0
  %72 = vmatmul.mubr.bf16.gmra.mxu0 %v34
  %v73 = vpop.f32.mrf.mxu0
  %v74 = vadd.f32 0.0, %v73
  %v75 = vpop.f32.mrf.mxu0
  %v76 = vpop.f32.mrf.mxu0
  %v77 = vadd.f32 0.0, %v76
  %v78 = vpop.f32.mrf.mxu0
  %79 = vmatprep.mubr.bf16.mxu0 0
  %80 = vmatmul.mubr.bf16.gmra.mxu0 %v37
  %v81 = vpop.f32.mrf.mxu0
  %v82 = vadd.f32 0.0, %v81
  %v83 = vpop.f32.mrf.mxu0
  %v84 = vpop.f32.mrf.mxu0
  %v85 = vadd.f32 0.0, %v84
  %v86 = vpop.f32.mrf.mxu0
  %87 = vdwg.mxu0
  %vm88 = vcmask 130048
  %89 = vst.msk [vmem:[%s2] sm:$0xff] %vm88, %v74
  %90 = vst.msk [vmem:[%s2 + $0x8] sm:$0xff] %vm88, %v77
  %91 = vst.msk [vmem:[%s2 + $0x10] sm:$0xff] %vm88, %v82
  %92 = vst.msk [vmem:[%s2 + $0x18] sm:$0xff] %vm88, %v85
  // Predicated region
  $region10: #{ricrd_forward.4} parent=0 // pred_check
    _
  $region11: #{ricrd_forward.4} parent=0 // pred_check_branch
    %94 = sbr.rel (0) target = $region13
  $region12: #{ricrd_forward.4} parent=0 // pred_region
    _
  $region13: #{ricrd_forward.4} parent=0 // pred_fallthru
    _
  // Predicated region
  $region14: #{ricrd_forward.4} parent=0 // pred_check
    _
  $region15: #{ricrd_forward.4} parent=0 // pred_check_branch
    %96 = sbr.rel (0) target = $region17
  $region16: #{ricrd_forward.4} parent=0 // pred_region
    _
  $region17: #{ricrd_forward.4} parent=0 // pred_fallthru
    _

// kernel: ricrd_forward.7
$region0: #{ricrd_forward.7}
  #allocation0 [shape = 'u32[]', space=smem, size = 0x4, offset = 0x4, fixed_abs, tag = 'smem constant byte address 0x4 - core index']
  #allocation1 [shape = 'u32[144,128]{1,0:T(1,128)}', space=vmem, size = 0x12000, scoped, tag = 'internal scratch']
  %s0 = inlined_call_operand.vmem [shape: bf16[32,32], index: 0, kind: input, shape index: {}]
  %s1 = inlined_call_operand.vmem [shape: f32[32,128], index: 1, kind: input, shape index: {}]
  %s2 = inlined_call_operand.vmem [shape: f32[1,128], index: 2, kind: input, shape index: {}]
  %s3 = inlined_call_operand.vmem [shape: f32[32,128], index: 3, kind: output, shape index: {}]
  %s4 = sld [smem:[#allocation0]]
  $region22: #{ricrd_forward.7} parent=0
    _
  %s6 = ssub.s32 1, %s4
  %s7 = scalar_select 0, %s6, %s4
  // Predicated region
  $region2: #{ricrd_forward.7} parent=0 // pred_check
    _
  $region3: #{ricrd_forward.7} parent=0 // pred_check_branch
    %9 = sbr.rel (0) target = $region5
  $region4: #{ricrd_forward.7} parent=0 // pred_region
    _
  $region5: #{ricrd_forward.7} parent=0 // pred_fallthru
    _
  // Predicated region
  $region6: #{ricrd_forward.7} parent=0 // pred_check
    _
  $region7: #{ricrd_forward.7} parent=0 // pred_check_branch
    %11 = sbr.rel (0) target = $region9
  $region8: #{ricrd_forward.7} parent=0 // pred_region
    _
  $region9: #{ricrd_forward.7} parent=0 // pred_fallthru
    _
  // Predicated region
  $region10: #{ricrd_forward.7} parent=0 // pred_check
    _
  $region11: #{ricrd_forward.7} parent=0 // pred_check_branch
    %13 = sbr.rel (0) target = $region13
  $region12: #{ricrd_forward.7} parent=0 // pred_region
    _
  $region13: #{ricrd_forward.7} parent=0 // pred_fallthru
    _
  %v15 = vld [vmem:[%s0] sm:$0xf]
  %v16 = vld [vmem:[%s0 + $0x4] sm:$0xf]
  %v17 = vld [vmem:[%s0 + $0x8] sm:$0xf]
  %v18 = vld [vmem:[%s0 + $0xc] sm:$0xf]
  %v19 = vld [vmem:[%s1] sm:$0xff]
  %v20 = vld [vmem:[%s1 + $0x8] sm:$0xff]
  %v21 = vld [vmem:[%s1 + $0x10] sm:$0xff]
  %v22 = vld [vmem:[%s1 + $0x18] sm:$0xff]
  %v23 = vpack.c.bf16 %v20, %v19
  %v24 = vpack.c.bf16 %v22, %v21
  %v25 = vld [vmem:[%s2] sm:$0x1]
  %v27 = vlaneseq
  %v28 = vshrl.u32 %v27, 7
  %v29 = vsub.s32 0, %v28
  %v30 = vrot.slane %v25, %v29
  %v36 = vunpack.c.l.b16 %v15
  %v37 = vunpack.c.l.b16 %v16
  %v38 = vunpack.c.l.b16 %v17
  %v39 = vunpack.c.l.b16 %v18
  %v40 = vpack.c.b16 %v37, %v36
  %v41 = vpack.c.b16 %v39, %v38
  %vm42 = vcmask 261120
  %v44 = vsel %vm42, %v40, 0
  %v47 = vsel %vm42, %v41, 0
  %49 = vmatprep.subr.bf16.mxu0 0
  %50 = vmatpush1.bf16.msra.mxu0 0
  %51 = vmatprep.subr.bf16.mxu0 0
  %52 = vmatpush1.bf16.msra.mxu0 0
  %53 = vmatprep.subr.bf16.mxu0 0
  %54 = vmatpush1.bf16.msra.mxu0 0
  %55 = vmatprep.subr.bf16.mxu0 0
  %56 = vmatpush1.bf16.msra.mxu0 0
  %57 = vmatprep.subr.bf16.mxu0 0
  %58 = vmatpush1.bf16.msra.mxu0 0
  %59 = vmatprep.subr.bf16.mxu0 0
  %60 = vmatpush1.bf16.msra.mxu0 0
  %61 = vmatprep.subr.bf16.mxu0 0
  %62 = vmatpush1.bf16.msra.mxu0 %v24
  %63 = vmatprep.subr.bf16.mxu0 0
  %64 = vmatpush1.bf16.msra.mxu0 %v23
  %65 = vmatprep.subr.bf16.mxu0 0
  %66 = vmatpush2.bf16.msra.mxu0 0
  %67 = vmatprep.subr.bf16.mxu0 0
  %68 = vmatpush2.bf16.msra.mxu0 0
  %69 = vmatprep.subr.bf16.mxu0 0
  %70 = vmatpush2.bf16.msra.mxu0 0
  %71 = vmatprep.subr.bf16.mxu0 0
  %72 = vmatpush2.bf16.msra.mxu0 0
  %73 = vmatprep.subr.bf16.mxu0 0
  %74 = vmatpush2.bf16.msra.mxu0 0
  %75 = vmatprep.subr.bf16.mxu0 0
  %76 = vmatpush2.bf16.msra.mxu0 0
  %77 = vmatprep.subr.bf16.mxu0 0
  %78 = vmatpush2.bf16.msra.mxu0 0
  %79 = vmatprep.subr.bf16.mxu0 0
  %80 = vmatpush2.bf16.msra.mxu0 0
  %81 = vmatprep.mubr.bf16.mxu0 0
  %82 = vmatmul.mubr.bf16.gmra.mxu0 %v44
  %v83 = vpop.f32.mrf.mxu0
  %v84 = vadd.f32 %v30, %v83
  %v85 = vpop.f32.mrf.mxu0
  %v86 = vpop.f32.mrf.mxu0
  %v87 = vadd.f32 %v30, %v86
  %v88 = vpop.f32.mrf.mxu0
  %89 = vmatprep.mubr.bf16.mxu0 0
  %90 = vmatmul.mubr.bf16.gmra.mxu0 %v47
  %v91 = vpop.f32.mrf.mxu0
  %v92 = vadd.f32 %v30, %v91
  %v93 = vpop.f32.mrf.mxu0
  %v94 = vpop.f32.mrf.mxu0
  %v95 = vadd.f32 %v30, %v94
  %v96 = vpop.f32.mrf.mxu0
  %97 = vdwg.mxu0
  %v98 = vmax.f32 %v84, 0.0
  %v99 = vmax.f32 %v87, 0.0
  %v100 = vmax.f32 %v92, 0.0
  %v101 = vmax.f32 %v95, 0.0
  %102 = vst [vmem:[%s3] sm:$0xff] %v98
  %103 = vst [vmem:[%s3 + $0x8] sm:$0xff] %v99
  %104 = vst [vmem:[%s3 + $0x10] sm:$0xff] %v100
  %105 = vst [vmem:[%s3 + $0x18] sm:$0xff] %v101
  // Predicated region
  $region14: #{ricrd_forward.7} parent=0 // pred_check
    _
  $region15: #{ricrd_forward.7} parent=0 // pred_check_branch
    %107 = sbr.rel (0) target = $region17
  $region16: #{ricrd_forward.7} parent=0 // pred_region
    _
  $region17: #{ricrd_forward.7} parent=0 // pred_fallthru
    _
  // Predicated region
  $region18: #{ricrd_forward.7} parent=0 // pred_check
    _
  $region19: #{ricrd_forward.7} parent=0 // pred_check_branch
    %109 = sbr.rel (0) target = $region21
  $region20: #{ricrd_forward.7} parent=0 // pred_region
    _
  $region21: #{ricrd_forward.7} parent=0 // pred_fallthru
    _

// kernel: ricrd_forward.6
$region0: #{ricrd_forward.6}
  #allocation0 [shape = 'u32[]', space=smem, size = 0x4, offset = 0x4, fixed_abs, tag = 'smem constant byte address 0x4 - core index']
  #allocation1 [shape = 'u32[144,128]{1,0:T(1,128)}', space=vmem, size = 0x12000, scoped, tag = 'internal scratch']
  %s0 = inlined_call_operand.vmem [shape: bf16[32,32], index: 0, kind: input, shape index: {}]
  %s1 = inlined_call_operand.vmem [shape: f32[32,16], index: 1, kind: input, shape index: {}]
  %s2 = inlined_call_operand.vmem [shape: f32[32,16], index: 2, kind: input, shape index: {}]
  %s3 = inlined_call_operand.vmem [shape: f32[32,16], index: 3, kind: input, shape index: {}]
  %s4 = inlined_call_operand.vmem [shape: f32[32,1], index: 4, kind: input, shape index: {}]
  %s5 = inlined_call_operand.vmem [shape: f32[32,1], index: 5, kind: input, shape index: {}]
  %s6 = inlined_call_operand.vmem [shape: bf16[16,128], index: 6, kind: input, shape index: {}]
  %s7 = inlined_call_operand.vmem [shape: bf16[16,128], index: 7, kind: input, shape index: {}]
  %s8 = inlined_call_operand.vmem [shape: bf16[16,128], index: 8, kind: input, shape index: {}]
  %s9 = inlined_call_operand.vmem [shape: bf16[16,128], index: 9, kind: input, shape index: {}]
  %s10 = inlined_call_operand.vmem [shape: f32[32,128], index: 10, kind: output, shape index: {}]
  %s11 = sld [smem:[#allocation0]]
  $region50: #{ricrd_forward.6} parent=0
    _
  %s13 = ssub.s32 1, %s11
  %s14 = scalar_select 0, %s13, %s11
  // Predicated region
  $region2: #{ricrd_forward.6} parent=0 // pred_check
    _
  $region3: #{ricrd_forward.6} parent=0 // pred_check_branch
    %16 = sbr.rel (0) target = $region5
  $region4: #{ricrd_forward.6} parent=0 // pred_region
    _
  $region5: #{ricrd_forward.6} parent=0 // pred_fallthru
    _
  // Predicated region
  $region6: #{ricrd_forward.6} parent=0 // pred_check
    _
  $region7: #{ricrd_forward.6} parent=0 // pred_check_branch
    %18 = sbr.rel (0) target = $region9
  $region8: #{ricrd_forward.6} parent=0 // pred_region
    _
  $region9: #{ricrd_forward.6} parent=0 // pred_fallthru
    _
  // Predicated region
  $region10: #{ricrd_forward.6} parent=0 // pred_check
    _
  $region11: #{ricrd_forward.6} parent=0 // pred_check_branch
    %20 = sbr.rel (0) target = $region13
  $region12: #{ricrd_forward.6} parent=0 // pred_region
    _
  $region13: #{ricrd_forward.6} parent=0 // pred_fallthru
    _
  // Predicated region
  $region14: #{ricrd_forward.6} parent=0 // pred_check
    _
  $region15: #{ricrd_forward.6} parent=0 // pred_check_branch
    %22 = sbr.rel (0) target = $region17
  $region16: #{ricrd_forward.6} parent=0 // pred_region
    _
  $region17: #{ricrd_forward.6} parent=0 // pred_fallthru
    _
  // Predicated region
  $region18: #{ricrd_forward.6} parent=0 // pred_check
    _
  $region19: #{ricrd_forward.6} parent=0 // pred_check_branch
    %24 = sbr.rel (0) target = $region21
  $region20: #{ricrd_forward.6} parent=0 // pred_region
    _
  $region21: #{ricrd_forward.6} parent=0 // pred_fallthru
    _
  // Predicated region
  $region22: #{ricrd_forward.6} parent=0 // pred_check
    _
  $region23: #{ricrd_forward.6} parent=0 // pred_check_branch
    %26 = sbr.rel (0) target = $region25
  $region24: #{ricrd_forward.6} parent=0 // pred_region
    _
  $region25: #{ricrd_forward.6} parent=0 // pred_fallthru
    _
  // Predicated region
  $region26: #{ricrd_forward.6} parent=0 // pred_check
    _
  $region27: #{ricrd_forward.6} parent=0 // pred_check_branch
    %28 = sbr.rel (0) target = $region29
  $region28: #{ricrd_forward.6} parent=0 // pred_region
    _
  $region29: #{ricrd_forward.6} parent=0 // pred_fallthru
    _
  // Predicated region
  $region30: #{ricrd_forward.6} parent=0 // pred_check
    _
  $region31: #{ricrd_forward.6} parent=0 // pred_check_branch
    %30 = sbr.rel (0) target = $region33
  $region32: #{ricrd_forward.6} parent=0 // pred_region
    _
  $region33: #{ricrd_forward.6} parent=0 // pred_fallthru
    _
  // Predicated region
  $region34: #{ricrd_forward.6} parent=0 // pred_check
    _
  $region35: #{ricrd_forward.6} parent=0 // pred_check_branch
    %32 = sbr.rel (0) target = $region37
  $region36: #{ricrd_forward.6} parent=0 // pred_region
    _
  $region37: #{ricrd_forward.6} parent=0 // pred_fallthru
    _
  // Predicated region
  $region38: #{ricrd_forward.6} parent=0 // pred_check
    _
  $region39: #{ricrd_forward.6} parent=0 // pred_check_branch
    %34 = sbr.rel (0) target = $region41
  $region40: #{ricrd_forward.6} parent=0 // pred_region
    _
  $region41: #{ricrd_forward.6} parent=0 // pred_fallthru
    _
  %s36 = smul.u32 0, 32
  %v37 = vld [vmem:[%s1] sm:$0xff]
  %v38 = vld [vmem:[%s1 + $0x8] sm:$0xff]
  %v39 = vld [vmem:[%s1 + $0x10] sm:$0xff]
  %v40 = vld [vmem:[%s1 + $0x18] sm:$0xff]
  %v41 = vld [vmem:[%s2] sm:$0xff]
  %v42 = vld [vmem:[%s2 + $0x8] sm:$0xff]
  %v43 = vld [vmem:[%s2 + $0x10] sm:$0xff]
  %v44 = vld [vmem:[%s2 + $0x18] sm:$0xff]
  %v45 = vld [vmem:[%s3] sm:$0xff]
  %v46 = vld [vmem:[%s3 + $0x8] sm:$0xff]
  %v47 = vld [vmem:[%s3 + $0x10] sm:$0xff]
  %v48 = vld [vmem:[%s3 + $0x18] sm:$0xff]
  %s49 = scalar_lea.vmem %s3, %s36
  %v50 = vld [vmem:[%s49] sm:$0xff]
  %v51 = vld [vmem:[%s49 + $0x8] sm:$0xff]
  %v52 = vld [vmem:[%s49 + $0x10] sm:$0xff]
  %v53 = vld [vmem:[%s49 + $0x18] sm:$0xff]
  %v54 = vld [vmem:[%s0] sm:$0xf]
  %v55 = vld [vmem:[%s0 + $0x4] sm:$0xf]
  %v56 = vld [vmem:[%s0 + $0x8] sm:$0xf]
  %v57 = vld [vmem:[%s0 + $0xc] sm:$0xf]
  %v58 = vpack.c.bf16 %v46, %v45
  %v59 = vpack.c.bf16 %v48, %v47
  %v64 = vunpack.c.l.b16 %v54
  %v65 = vunpack.c.l.b16 %v55
  %v66 = vunpack.c.l.b16 %v56
  %v67 = vunpack.c.l.b16 %v57
  %v68 = vpack.c.b16 %v65, %v64
  %v69 = vpack.c.b16 %v67, %v66
  %vm70 = vcmask 261120
  %v72 = vsel %vm70, %v68, 0
  %v75 = vsel %vm70, %v69, 0
  %77 = vmatprep.subr.bf16.mxu0 0
  %78 = vmatpush1.bf16.msra.mxu0 0
  %79 = vmatprep.subr.bf16.mxu0 0
  %80 = vmatpush1.bf16.msra.mxu0 0
  %81 = vmatprep.subr.bf16.mxu0 0
  %82 = vmatpush1.bf16.msra.mxu0 0
  %83 = vmatprep.subr.bf16.mxu0 0
  %84 = vmatpush1.bf16.msra.mxu0 0
  %85 = vmatprep.subr.bf16.mxu0 0
  %86 = vmatpush1.bf16.msra.mxu0 0
  %87 = vmatprep.subr.bf16.mxu0 0
  %88 = vmatpush1.bf16.msra.mxu0 0
  %89 = vmatprep.subr.bf16.mxu0 0
  %90 = vmatpush1.bf16.msra.mxu0 %v59
  %91 = vmatprep.subr.bf16.mxu0 0
  %92 = vmatpush1.bf16.msra.mxu0 %v58
  %93 = vmatprep.subr.bf16.mxu0 0
  %94 = vmatpush2.bf16.msra.mxu0 0
  %95 = vmatprep.subr.bf16.mxu0 0
  %96 = vmatpush2.bf16.msra.mxu0 0
  %97 = vmatprep.subr.bf16.mxu0 0
  %98 = vmatpush2.bf16.msra.mxu0 0
  %99 = vmatprep.subr.bf16.mxu0 0
  %100 = vmatpush2.bf16.msra.mxu0 0
  %101 = vmatprep.subr.bf16.mxu0 0
  %102 = vmatpush2.bf16.msra.mxu0 0
  %103 = vmatprep.subr.bf16.mxu0 0
  %104 = vmatpush2.bf16.msra.mxu0 0
  %105 = vmatprep.subr.bf16.mxu0 0
  %106 = vmatpush2.bf16.msra.mxu0 0
  %107 = vmatprep.subr.bf16.mxu0 0
  %108 = vmatpush2.bf16.msra.mxu0 0
  %109 = vmatprep.mubr.bf16.mxu0 0
  %110 = vmatmul.mubr.bf16.gmra.mxu0 %v72
  %v111 = vpop.f32.mrf.mxu0
  %v112 = vadd.f32 0.0, %v111
  %v113 = vpop.f32.mrf.mxu0
  %v114 = vpop.f32.mrf.mxu0
  %v115 = vadd.f32 0.0, %v114
  %v116 = vpop.f32.mrf.mxu0
  %117 = vmatprep.mubr.bf16.mxu0 0
  %118 = vmatmul.mubr.bf16.gmra.mxu0 %v75
  %v119 = vpop.f32.mrf.mxu0
  %v120 = vadd.f32 0.0, %v119
  %v121 = vpop.f32.mrf.mxu0
  %v122 = vpop.f32.mrf.mxu0
  %v123 = vadd.f32 0.0, %v122
  %v124 = vpop.f32.mrf.mxu0
  %125 = vdwg.mxu0
  %v126 = vld [vmem:[%s4] sm:$0xff]
  %v127 = vld [vmem:[%s4 + $0x8] sm:$0xff]
  %v128 = vld [vmem:[%s4 + $0x10] sm:$0xff]
  %v129 = vld [vmem:[%s4 + $0x18] sm:$0xff]
  %v130 = vld [vmem:[%s5] sm:$0xff]
  %v131 = vld [vmem:[%s5 + $0x8] sm:$0xff]
  %v132 = vld [vmem:[%s5 + $0x10] sm:$0xff]
  %v133 = vld [vmem:[%s5 + $0x18] sm:$0xff]
  %135 = vset.pattern.permute.xlu0 0
  %136 = vperm.xlu0 %135, %v126
  %v137 = vpop.permute.xlu0 %136
  %140 = vset.pattern.permute.xlu0 0
  %141 = vperm.xlu0 %140, %v127
  %v142 = vpop.permute.xlu0 %141
  %145 = vset.pattern.permute.xlu0 0
  %146 = vperm.xlu0 %145, %v128
  %v147 = vpop.permute.xlu0 %146
  %150 = vset.pattern.permute.xlu0 0
  %151 = vperm.xlu0 %150, %v129
  %v152 = vpop.permute.xlu0 %151
  %v154 = vmul.f32 %v137, %v37
  %v155 = vmul.f32 %v142, %v38
  %v156 = vmul.f32 %v147, %v39
  %v157 = vmul.f32 %v152, %v40
  %v158 = vsub.f32 %v50, %v154
  %v159 = vsub.f32 %v51, %v155
  %v160 = vsub.f32 %v52, %v156
  %v161 = vsub.f32 %v53, %v157
  %v162 = vmul.f32 %v137, %v41
  %v163 = vmul.f32 %v142, %v42
  %v164 = vmul.f32 %v147, %v43
  %v165 = vmul.f32 %v152, %v44
  %v166 = vsub.f32 %v112, %v162
  %v167 = vsub.f32 %v115, %v163
  %v168 = vsub.f32 %v120, %v164
  %v169 = vsub.f32 %v123, %v165
  %171 = vset.pattern.permute.xlu0 0
  %172 = vperm.xlu0 %171, %v130
  %v173 = vpop.permute.xlu0 %172
  %176 = vset.pattern.permute.xlu0 0
  %177 = vperm.xlu0 %176, %v131
  %v178 = vpop.permute.xlu0 %177
  %181 = vset.pattern.permute.xlu0 0
  %182 = vperm.xlu0 %181, %v132
  %v183 = vpop.permute.xlu0 %182
  %186 = vset.pattern.permute.xlu0 0
  %187 = vperm.xlu0 %186, %v133
  %v188 = vpop.permute.xlu0 %187
  %v190 = vmul.f32 %v173, %v37
  %v191 = vmul.f32 %v178, %v38
  %v192 = vmul.f32 %v183, %v39
  %v193 = vmul.f32 %v188, %v40
  %v194 = vsub.f32 %v166, %v190
  %v195 = vsub.f32 %v167, %v191
  %v196 = vsub.f32 %v168, %v192
  %v197 = vsub.f32 %v169, %v193
  %v198 = vpack.c.bf16 %v38, %v37
  %v199 = vpack.c.bf16 %v40, %v39
  %v200 = vld [vmem:[%s6] sm:$0xf]
  %v201 = vld [vmem:[%s6 + $0x4] sm:$0xf]
  %v202 = vpack.c.bf16 %v42, %v41
  %v203 = vpack.c.bf16 %v44, %v43
  %v204 = vld [vmem:[%s7] sm:$0xf]
  %v205 = vld [vmem:[%s7 + $0x4] sm:$0xf]
  %v208 = vunpack.c.l.b16 %v204
  %v209 = vunpack.c.l.b16 %v205
  %v210 = vpack.c.b16 %v209, %v208
  %vm212 = vcmask 130048
  %v214 = vsel %vm212, %v202, 0
  %v217 = vsel %vm212, %v203, 0
  %219 = vmatprep.subr.bf16.mxu0 0
  %220 = vmatpush1.bf16.msra.mxu0 0
  %221 = vmatprep.subr.bf16.mxu0 0
  %222 = vmatpush1.bf16.msra.mxu0 0
  %223 = vmatprep.subr.bf16.mxu0 0
  %224 = vmatpush1.bf16.msra.mxu0 0
  %225 = vmatprep.subr.bf16.mxu0 0
  %226 = vmatpush1.bf16.msra.mxu0 0
  %227 = vmatprep.subr.bf16.mxu0 0
  %228 = vmatpush1.bf16.msra.mxu0 0
  %229 = vmatprep.subr.bf16.mxu0 0
  %230 = vmatpush1.bf16.msra.mxu0 0
  %231 = vmatprep.subr.bf16.mxu0 0
  %232 = vmatpush1.bf16.msra.mxu0 0
  %233 = vmatprep.subr.bf16.mxu0 0
  %234 = vmatpush1.bf16.msra.mxu0 %v210
  %235 = vmatprep.subr.bf16.mxu0 0
  %236 = vmatpush2.bf16.msra.mxu0 0
  %237 = vmatprep.subr.bf16.mxu0 0
  %238 = vmatpush2.bf16.msra.mxu0 0
  %239 = vmatprep.subr.bf16.mxu0 0
  %240 = vmatpush2.bf16.msra.mxu0 0
  %241 = vmatprep.subr.bf16.mxu0 0
  %242 = vmatpush2.bf16.msra.mxu0 0
  %243 = vmatprep.subr.bf16.mxu0 0
  %244 = vmatpush2.bf16.msra.mxu0 0
  %245 = vmatprep.subr.bf16.mxu0 0
  %246 = vmatpush2.bf16.msra.mxu0 0
  %247 = vmatprep.subr.bf16.mxu0 0
  %248 = vmatpush2.bf16.msra.mxu0 0
  %249 = vmatprep.subr.bf16.mxu0 0
  %250 = vmatpush2.bf16.msra.mxu0 0
  %251 = vmatprep.mubr.bf16.mxu0 0
  %252 = vmatmul.mubr.bf16.gmra.mxu0 %v214
  %v253 = vpop.f32.mrf.mxu0
  %v254 = vadd.f32 0.0, %v253
  %v255 = vpop.f32.mrf.mxu0
  %v256 = vpop.f32.mrf.mxu0
  %v257 = vadd.f32 0.0, %v256
  %v258 = vpop.f32.mrf.mxu0
  %259 = vmatprep.mubr.bf16.mxu0 0
  %260 = vmatmul.mubr.bf16.gmra.mxu0 %v217
  %v261 = vpop.f32.mrf.mxu0
  %v262 = vadd.f32 0.0, %v261
  %v263 = vpop.f32.mrf.mxu0
  %v264 = vpop.f32.mrf.mxu0
  %v265 = vadd.f32 0.0, %v264
  %v266 = vpop.f32.mrf.mxu0
  %267 = vdwg.mxu0
  %v270 = vunpack.c.l.b16 %v200
  %v271 = vunpack.c.l.b16 %v201
  %v272 = vpack.c.b16 %v271, %v270
  %v275 = vsel %vm212, %v198, 0
  %v278 = vsel %vm212, %v199, 0
  %280 = vmatprep.subr.bf16.mxu0 0
  %281 = vmatpush1.bf16.msra.mxu0 0
  %282 = vmatprep.subr.bf16.mxu0 0
  %283 = vmatpush1.bf16.msra.mxu0 0
  %284 = vmatprep.subr.bf16.mxu0 0
  %285 = vmatpush1.bf16.msra.mxu0 0
  %286 = vmatprep.subr.bf16.mxu0 0
  %287 = vmatpush1.bf16.msra.mxu0 0
  %288 = vmatprep.subr.bf16.mxu0 0
  %289 = vmatpush1.bf16.msra.mxu0 0
  %290 = vmatprep.subr.bf16.mxu0 0
  %291 = vmatpush1.bf16.msra.mxu0 0
  %292 = vmatprep.subr.bf16.mxu0 0
  %293 = vmatpush1.bf16.msra.mxu0 0
  %294 = vmatprep.subr.bf16.mxu0 0
  %295 = vmatpush1.bf16.msra.mxu0 %v272
  %296 = vmatprep.subr.bf16.mxu0 0
  %297 = vmatpush2.bf16.msra.mxu0 0
  %298 = vmatprep.subr.bf16.mxu0 0
  %299 = vmatpush2.bf16.msra.mxu0 0
  %300 = vmatprep.subr.bf16.mxu0 0
  %301 = vmatpush2.bf16.msra.mxu0 0
  %302 = vmatprep.subr.bf16.mxu0 0
  %303 = vmatpush2.bf16.msra.mxu0 0
  %304 = vmatprep.subr.bf16.mxu0 0
  %305 = vmatpush2.bf16.msra.mxu0 0
  %306 = vmatprep.subr.bf16.mxu0 0
  %307 = vmatpush2.bf16.msra.mxu0 0
  %308 = vmatprep.subr.bf16.mxu0 0
  %309 = vmatpush2.bf16.msra.mxu0 0
  %310 = vmatprep.subr.bf16.mxu0 0
  %311 = vmatpush2.bf16.msra.mxu0 0
  %312 = vmatprep.mubr.bf16.mxu0 0
  %313 = vmatmul.mubr.bf16.gmra.mxu0 %v275
  %v314 = vpop.f32.mrf.mxu0
  %v315 = vadd.f32 %v254, %v314
  %v316 = vpop.f32.mrf.mxu0
  %v317 = vpop.f32.mrf.mxu0
  %v318 = vadd.f32 %v257, %v317
  %v319 = vpop.f32.mrf.mxu0
  %320 = vmatprep.mubr.bf16.mxu0 0
  %321 = vmatmul.mubr.bf16.gmra.mxu0 %v278
  %v322 = vpop.f32.mrf.mxu0
  %v323 = vadd.f32 %v262, %v322
  %v324 = vpop.f32.mrf.mxu0
  %v325 = vpop.f32.mrf.mxu0
  %v326 = vadd.f32 %v265, %v325
  %v327 = vpop.f32.mrf.mxu0
  %328 = vdwg.mxu0
  %v329 = vpack.c.bf16 %v159, %v158
  %v330 = vpack.c.bf16 %v161, %v160
  %v331 = vld [vmem:[%s8] sm:$0xf]
  %v332 = vld [vmem:[%s8 + $0x4] sm:$0xf]
  %v335 = vunpack.c.l.b16 %v331
  %v336 = vunpack.c.l.b16 %v332
  %v337 = vpack.c.b16 %v336, %v335
  %v340 = vsel %vm212, %v329, 0
  %v343 = vsel %vm212, %v330, 0
  %345 = vmatprep.subr.bf16.mxu0 0
  %346 = vmatpush1.bf16.msra.mxu0 0
  %347 = vmatprep.subr.bf16.mxu0 0
  %348 = vmatpush1.bf16.msra.mxu0 0
  %349 = vmatprep.subr.bf16.mxu0 0
  %350 = vmatpush1.bf16.msra.mxu0 0
  %351 = vmatprep.subr.bf16.mxu0 0
  %352 = vmatpush1.bf16.msra.mxu0 0
  %353 = vmatprep.subr.bf16.mxu0 0
  %354 = vmatpush1.bf16.msra.mxu0 0
  %355 = vmatprep.subr.bf16.mxu0 0
  %356 = vmatpush1.bf16.msra.mxu0 0
  %357 = vmatprep.subr.bf16.mxu0 0
  %358 = vmatpush1.bf16.msra.mxu0 0
  %359 = vmatprep.subr.bf16.mxu0 0
  %360 = vmatpush1.bf16.msra.mxu0 %v337
  %361 = vmatprep.subr.bf16.mxu0 0
  %362 = vmatpush2.bf16.msra.mxu0 0
  %363 = vmatprep.subr.bf16.mxu0 0
  %364 = vmatpush2.bf16.msra.mxu0 0
  %365 = vmatprep.subr.bf16.mxu0 0
  %366 = vmatpush2.bf16.msra.mxu0 0
  %367 = vmatprep.subr.bf16.mxu0 0
  %368 = vmatpush2.bf16.msra.mxu0 0
  %369 = vmatprep.subr.bf16.mxu0 0
  %370 = vmatpush2.bf16.msra.mxu0 0
  %371 = vmatprep.subr.bf16.mxu0 0
  %372 = vmatpush2.bf16.msra.mxu0 0
  %373 = vmatprep.subr.bf16.mxu0 0
  %374 = vmatpush2.bf16.msra.mxu0 0
  %375 = vmatprep.subr.bf16.mxu0 0
  %376 = vmatpush2.bf16.msra.mxu0 0
  %377 = vmatprep.mubr.bf16.mxu0 0
  %378 = vmatmul.mubr.bf16.gmra.mxu0 %v340
  %v379 = vpop.f32.mrf.mxu0
  %v380 = vadd.f32 0.0, %v379
  %v381 = vpop.f32.mrf.mxu0
  %v382 = vpop.f32.mrf.mxu0
  %v383 = vadd.f32 0.0, %v382
  %v384 = vpop.f32.mrf.mxu0
  %385 = vmatprep.mubr.bf16.mxu0 0
  %386 = vmatmul.mubr.bf16.gmra.mxu0 %v343
  %v387 = vpop.f32.mrf.mxu0
  %v388 = vadd.f32 0.0, %v387
  %v389 = vpop.f32.mrf.mxu0
  %v390 = vpop.f32.mrf.mxu0
  %v391 = vadd.f32 0.0, %v390
  %v392 = vpop.f32.mrf.mxu0
  %393 = vdwg.mxu0
  %v394 = vadd.f32 %v315, %v380
  %v395 = vadd.f32 %v318, %v383
  %v396 = vadd.f32 %v323, %v388
  %v397 = vadd.f32 %v326, %v391
  %v398 = vpack.c.bf16 %v195, %v194
  %v399 = vpack.c.bf16 %v197, %v196
  %v400 = vld [vmem:[%s9] sm:$0xf]
  %v401 = vld [vmem:[%s9 + $0x4] sm:$0xf]
  %v404 = vunpack.c.l.b16 %v400
  %v405 = vunpack.c.l.b16 %v401
  %v406 = vpack.c.b16 %v405, %v404
  %v409 = vsel %vm212, %v398, 0
  %v412 = vsel %vm212, %v399, 0
  %414 = vmatprep.subr.bf16.mxu0 0
  %415 = vmatpush1.bf16.msra.mxu0 0
  %416 = vmatprep.subr.bf16.mxu0 0
  %417 = vmatpush1.bf16.msra.mxu0 0
  %418 = vmatprep.subr.bf16.mxu0 0
  %419 = vmatpush1.bf16.msra.mxu0 0
  %420 = vmatprep.subr.bf16.mxu0 0
  %421 = vmatpush1.bf16.msra.mxu0 0
  %422 = vmatprep.subr.bf16.mxu0 0
  %423 = vmatpush1.bf16.msra.mxu0 0
  %424 = vmatprep.subr.bf16.mxu0 0
  %425 = vmatpush1.bf16.msra.mxu0 0
  %426 = vmatprep.subr.bf16.mxu0 0
  %427 = vmatpush1.bf16.msra.mxu0 0
  %428 = vmatprep.subr.bf16.mxu0 0
  %429 = vmatpush1.bf16.msra.mxu0 %v406
  %430 = vmatprep.subr.bf16.mxu0 0
  %431 = vmatpush2.bf16.msra.mxu0 0
  %432 = vmatprep.subr.bf16.mxu0 0
  %433 = vmatpush2.bf16.msra.mxu0 0
  %434 = vmatprep.subr.bf16.mxu0 0
  %435 = vmatpush2.bf16.msra.mxu0 0
  %436 = vmatprep.subr.bf16.mxu0 0
  %437 = vmatpush2.bf16.msra.mxu0 0
  %438 = vmatprep.subr.bf16.mxu0 0
  %439 = vmatpush2.bf16.msra.mxu0 0
  %440 = vmatprep.subr.bf16.mxu0 0
  %441 = vmatpush2.bf16.msra.mxu0 0
  %442 = vmatprep.subr.bf16.mxu0 0
  %443 = vmatpush2.bf16.msra.mxu0 0
  %444 = vmatprep.subr.bf16.mxu0 0
  %445 = vmatpush2.bf16.msra.mxu0 0
  %446 = vmatprep.mubr.bf16.mxu0 0
  %447 = vmatmul.mubr.bf16.gmra.mxu0 %v409
  %v448 = vpop.f32.mrf.mxu0
  %v449 = vadd.f32 0.0, %v448
  %v450 = vpop.f32.mrf.mxu0
  %v451 = vpop.f32.mrf.mxu0
  %v452 = vadd.f32 0.0, %v451
  %v453 = vpop.f32.mrf.mxu0
  %454 = vmatprep.mubr.bf16.mxu0 0
  %455 = vmatmul.mubr.bf16.gmra.mxu0 %v412
  %v456 = vpop.f32.mrf.mxu0
  %v457 = vadd.f32 0.0, %v456
  %v458 = vpop.f32.mrf.mxu0
  %v459 = vpop.f32.mrf.mxu0
  %v460 = vadd.f32 0.0, %v459
  %v461 = vpop.f32.mrf.mxu0
  %462 = vdwg.mxu0
  %v463 = vadd.f32 %v394, %v449
  %v464 = vadd.f32 %v395, %v452
  %v465 = vadd.f32 %v396, %v457
  %v466 = vadd.f32 %v397, %v460
  %467 = vst [vmem:[%s10] sm:$0xff] %v463
  %468 = vst [vmem:[%s10 + $0x8] sm:$0xff] %v464
  %469 = vst [vmem:[%s10 + $0x10] sm:$0xff] %v465
  %470 = vst [vmem:[%s10 + $0x18] sm:$0xff] %v466
  // Predicated region
  $region42: #{ricrd_forward.6} parent=0 // pred_check
    _
  $region43: #{ricrd_forward.6} parent=0 // pred_check_branch
    %472 = sbr.rel (0) target = $region45
  $region44: #{ricrd_forward.6} parent=0 // pred_region
    _
  $region45: #{ricrd_forward.6} parent=0 // pred_fallthru
    _
  // Predicated region
  $region46: #{ricrd_forward.6} parent=0 // pred_check
    _
  $region47: #{ricrd_forward.6} parent=0 // pred_check_branch
    %474 = sbr.rel (0) target = $region49
  $region48: #{ricrd_forward.6} parent=0 // pred_region
    _
  $region49: #{ricrd_forward.6} parent=0 // pred_fallthru
    _

</llo_original>
